<compile_context>
chip_gen: v7x
topology: tpu7x:2x2x1
jax: 0.10.0
libtpu: 0.0.40
codegen_flags: <defaults>
</compile_context>

<pallas_src>
import functools
import math
from typing import NamedTuple

import jax
import jax.numpy as jnp
from jax.experimental import pallas as pl
from jax.experimental.pallas import tpu as pltpu


def _round_up(x: int, m: int) -> int:
    return ((x + m - 1) // m) * m


# --------------------------------------------------------------------------------------
# Hardware-aware planning helpers
# --------------------------------------------------------------------------------------

@functools.lru_cache(maxsize=1)
def _tpu_topology():
    """(usable VMEM bytes, #TensorCores a 'parallel' grid axis shards over, generation)."""
    vmem_cap = 64 << 20            # conservative fallback = v7x per-core VMEM
    num_cores = 1
    gen = "unknown"
    try:
        vmem_cap = int(pltpu.get_tpu_info().vmem_capacity_bytes)
    except Exception:
        pass
    try:
        kind = jax.devices()[0].device_kind.lower()
        if "v7" in kind:
            gen, num_cores = "v7", 2           # 2 TensorCores per chip
        elif "v6" in kind:
            gen = "v6"
        elif "v5" in kind:
            gen = "v5"
        elif "v4" in kind:
            gen, num_cores = "v4", 2           # megacore
    except Exception:
        pass
    headroom = 12 << 20                         # Mosaic internal scratch / other users
    usable = max(vmem_cap - headroom, 32 << 20)
    return usable, num_cores, gen


def _probe_copy_kernel(x_ref, o_ref):
    o_ref[...] = x_ref[...]


@functools.lru_cache(maxsize=1)
def _pipeline_mode_supported() -> bool:
    """True iff pl.BlockSpec(pipeline_mode=pl.Buffered(1)) lowers & runs on this backend."""
    try:
        fn = pl.pallas_call(
            _probe_copy_kernel,
            out_shape=jax.ShapeDtypeStruct((8, 128), jnp.float32),
            grid=(1,),
            in_specs=[pl.BlockSpec((8, 128), lambda i: (0, 0),
                                   pipeline_mode=pl.Buffered(1))],
            out_specs=pl.BlockSpec((8, 128), lambda i: (0, 0)),
        )
        jax.block_until_ready(fn(jnp.zeros((8, 128), jnp.float32)))
        return True
    except Exception:
        return False


def _pick_divisor_tile(total: int, desired: int) -> int:
    """Largest multiple of 128 that divides `total` and is <= desired (at least 128)."""
    desired = max(128, min(desired, total))
    best = 128
    cand = 128
    while cand <= desired:
        if total % cand == 0:
            best = cand
        cand += 128
    return best


# --------------------------------------------------------------------------------------
# Kernels
# --------------------------------------------------------------------------------------

def _ffn_kernel_resident(x_ref, w1_ref, b1_ref, w2_ref, b2_ref, o_ref):
    """num_k == 1: whole dff resident in VMEM -> no accumulator scratch, no init/finalize."""
    h = jnp.dot(x_ref[...], w1_ref[...], preferred_element_type=jnp.float32)
    h = jnp.maximum(h + b1_ref[...], 0.0)          # bias + ReLU in f32
    # TODO(synk): dropout is identity in eval mode; training-mode dropout would draw a
    #             mask with pltpu.prng_seed + pltpu.stateful_bernoulli here.
    h = h.astype(w2_ref.dtype)                     # back to compute dtype for the MXU
    y = jnp.dot(h, w2_ref[...], preferred_element_type=jnp.float32) + b2_ref[...]
    o_ref[...] = y.astype(o_ref.dtype)


def _ffn_kernel_ktiled(x_ref, w1_ref, b1_ref, w2_ref, b2_ref, o_ref, acc_ref):
    """num_k > 1: stream dff chunks, accumulate the second matmul in an f32 scratch."""
    k = pl.program_id(1)

    @pl.when(k == 0)
    def _init():
        # Fold b2 into the accumulator init (saves a full-tile f32 add in the finalize).
        acc_ref[...] = jnp.broadcast_to(b2_ref[...], acc_ref.shape).astype(jnp.float32)

    h = jnp.dot(x_ref[...], w1_ref[...], preferred_element_type=jnp.float32)
    h = jnp.maximum(h + b1_ref[...], 0.0)          # ReLU is elementwise -> exact per chunk
    h = h.astype(w2_ref.dtype)
    acc_ref[...] += jnp.dot(h, w2_ref[...], preferred_element_type=jnp.float32)

    @pl.when(k == pl.num_programs(1) - 1)
    def _finalize():
        o_ref[...] = acc_ref[...].astype(o_ref.dtype)


# --------------------------------------------------------------------------------------
# Parameter preparation (one-time pad + cast, hoisted out of the per-call path)
# --------------------------------------------------------------------------------------

class FFNParams(NamedTuple):
    w1: jax.Array      # (d_p, dff_p), compute dtype
    b1: jax.Array      # (1, dff_p), float32
    w2: jax.Array      # (dff_p, d_p), compute dtype
    b2: jax.Array      # (1, d_p), float32
    d_model: int
    dff: int


def prepare_ffn_params(w1, b1, w2, b2, compute_dtype=jnp.bfloat16) -> FFNParams:
    """Pad feature dims to multiples of 128 (lane-dense stores) and cast to the MXU
    compute dtype ONCE at init time; reuse the result across calls.

    compute_dtype=jnp.bfloat16 is an intentional precision trade-off (bf16 MXU operands,
    f32 accumulation); pass jnp.float32 for a numerically closer-but-slower fallback.
    """
    d_model, dff = w1.shape
    d_p = _round_up(d_model, 128)
    dff_p = _round_up(dff, 128)
    cdt = jnp.dtype(compute_dtype)
    w1_p = jnp.pad(w1, ((0, d_p - d_model), (0, dff_p - dff))).astype(cdt)
    w2_p = jnp.pad(w2, ((0, dff_p - dff), (0, d_p - d_model))).astype(cdt)
    b1_p = jnp.pad(b1, (0, dff_p - dff)).reshape(1, dff_p).astype(jnp.float32)
    b2_p = jnp.pad(b2, (0, d_p - d_model)).reshape(1, d_p).astype(jnp.float32)
    return FFNParams(w1_p, b1_p, w2_p, b2_p, int(d_model), int(dff))


# --------------------------------------------------------------------------------------
# Planning (static, outside jit) + jitted implementation
# --------------------------------------------------------------------------------------

class _FFNPlan(NamedTuple):
    tm: int
    tk: int
    num_m: int
    num_k: int
    m_pad: int
    w_bufs: int
    vmem_limit: int
    flops: int
    bytes_accessed: int


def _plan_ffn(x_shape, x_dtype, params: FFNParams, tm, dff_block, weight_buffers):
    d_p, dff_p = params.w1.shape
    itemsize_c = jnp.dtype(params.w1.dtype).itemsize
    itemsize_o = jnp.dtype(x_dtype).itemsize
    row_align = 16 if itemsize_c == 2 else 8       # bf16 packs 16 rows per sublane pair

    d_model = x_shape[-1]
    if d_model != params.d_model:
        raise ValueError(f"x last dim {d_model} != prepared d_model {params.d_model}")
    M = 1
    for s in x_shape[:-1]:
        M *= int(s)
    M = max(M, 1)

    vmem_usable, num_cores, gen = _tpu_topology()
    buffered_ok = _pipeline_mode_supported()

    def clamp_tm(t):
        t = min(_round_up(t, row_align), _round_up(M, row_align))
        # v7x / megacore: keep >= 1 row tile per TensorCore so "parallel" actually shards.
        if num_cores > 1 and M >= 256:
            t = min(t, _round_up(-(-M // num_cores), row_align))
        return max(t, row_align)

    def need_bytes(tm_e, tk, num_k, w_bufs):
        need = 2 * tm_e * d_p * itemsize_c              # x tile (double-buffered)
        need += 2 * tm_e * d_p * itemsize_o             # out tile (double-buffered)
        need += w_bufs * 2 * d_p * tk * itemsize_c      # W1 + W2 blocks
        need += 2 * 8 * (tk + d_p) * 4                  # biases (sublane-padded)
        need += tm_e * tk * (4 + itemsize_c)            # h intermediate (f32 + cast copy)
        need += tm_e * d_p * 4                          # 2nd matmul f32 result
        if num_k > 1:
            need += tm_e * d_p * 4                      # f32 accumulator scratch
        need += 2 << 20                                 # Mosaic internal scratch allowance
        return need

    # Prefer full weight residency (num_k == 1, single-buffered weights) whenever it fits.
    tm_base = clamp_tm(tm if tm is not None else 256)
    resident_bufs = 1 if buffered_ok else 2
    resident_fits = need_bytes(tm_base, dff_p, 1, resident_bufs) <= vmem_usable

    if dff_block is None and resident_fits:
        tm_eff, tk = tm_base, dff_p
    else:
        # K-tiled regime: weights are re-streamed from HBM once per row tile, so use a
        # bigger row tile (arithmetic intensity ~ tm FLOP/byte) everywhere except v5e.
        if tm is not None:
            tm_eff = clamp_tm(tm)
        else:
            tm_eff = clamp_tm(256 if gen == "v5" else 512)
        if dff_block is not None:
            tk_req = min(_round_up(dff_block, 128), dff_p)
            if dff_p >= 512:
                tk_req = max(tk_req, 512)      # tk < 512 underfills the 256x256 MXU
            tk = _pick_divisor_tile(dff_p, tk_req)
        else:
            tk = 128
            cand = 128
            while cand <= dff_p:               # largest dff chunk that fits the budget
                if dff_p % cand == 0 and need_bytes(tm_eff, cand, 2, 2) <= vmem_usable:
                    tk = cand
                cand += 128
    num_k = dff_p // tk

    m_pad = _round_up(M, tm_eff)
    num_m = m_pad // tm_eff

    if weight_buffers is None:
        # Resident weights (constant index map) gain nothing from double buffering but
        # double resident VMEM; re-streamed weights keep 2 (sweep 3 on v6e if DMA exposed).
        w_bufs = 1 if num_k == 1 else 2
    else:
        w_bufs = max(1, int(weight_buffers))
    if w_bufs != 2 and not buffered_ok:
        w_bufs = 2

    need = need_bytes(tm_eff, tk, num_k, w_bufs)
    vmem_limit = int(min(max(need + (4 << 20), 32 << 20), vmem_usable))

    flops = 4 * m_pad * d_p * dff_p                      # two matmuls, 2 flops per MAC
    weight_passes = 1 if num_k == 1 else num_m           # weights re-streamed when K-tiled
    bytes_accessed = int(
        m_pad * d_p * itemsize_c                         # x read
        + weight_passes * 2 * d_p * dff_p * itemsize_c   # W1 + W2 reads
        + (dff_p + d_p) * 4                              # biases
        + m_pad * d_p * itemsize_o                       # output write
    )
    return _FFNPlan(tm=tm_eff, tk=tk, num_m=num_m, num_k=num_k, m_pad=m_pad,
                    w_bufs=w_bufs, vmem_limit=vmem_limit, flops=int(flops),
                    bytes_accessed=bytes_accessed)


@functools.partial(jax.jit, static_argnames=("plan",))
def _feed_forward_impl(x, w1_p, b1_p, w2_p, b2_p, *, plan: _FFNPlan):
    orig_shape = x.shape
    orig_dtype = x.dtype
    d_model = orig_shape[-1]
    d_p, dff_p = w1_p.shape
    cdt = w1_p.dtype

    x2d = x.reshape(-1, d_model)
    M = x2d.shape[0]
    x_p = jnp.pad(x2d, ((0, plan.m_pad - M), (0, d_p - d_model))).astype(cdt)

    w_kwargs = {}
    if plan.w_bufs != 2:
        w_kwargs = dict(pipeline_mode=pl.Buffered(plan.w_bufs))

    common = dict(
        out_shape=jax.ShapeDtypeStruct((plan.m_pad, d_p), orig_dtype),
        compiler_params=pltpu.CompilerParams(
            dimension_semantics=(("parallel",) if plan.num_k == 1
                                 else ("parallel", "arbitrary")),
            vmem_limit_bytes=plan.vmem_limit,
        ),
        cost_estimate=pl.CostEstimate(flops=plan.flops, transcendentals=0,
                                      bytes_accessed=plan.bytes_accessed),
    )

    if plan.num_k == 1:
        grid_spec = pltpu.PrefetchScalarGridSpec(
            num_scalar_prefetch=0,
            grid=(plan.num_m,),
            in_specs=[
                pl.BlockSpec((plan.tm, d_p), lambda i: (i, 0)),              # x row tile
                pl.BlockSpec((d_p, dff_p), lambda i: (0, 0), **w_kwargs),    # W1 resident
                pl.BlockSpec((1, dff_p), lambda i: (0, 0)),                  # b1
                pl.BlockSpec((dff_p, d_p), lambda i: (0, 0), **w_kwargs),    # W2 resident
                pl.BlockSpec((1, d_p), lambda i: (0, 0)),                    # b2
            ],
            out_specs=pl.BlockSpec((plan.tm, d_p), lambda i: (i, 0)),
        )
        kernel = _ffn_kernel_resident
    else:
        grid_spec = pltpu.PrefetchScalarGridSpec(
            num_scalar_prefetch=0,
            grid=(plan.num_m, plan.num_k),                # reduction (dff) axis last
            in_specs=[
                pl.BlockSpec((plan.tm, d_p), lambda i, k: (i, 0)),           # x row tile
                pl.BlockSpec((d_p, plan.tk), lambda i, k: (0, k), **w_kwargs),  # W1 chunk
                pl.BlockSpec((1, plan.tk), lambda i, k: (0, k)),             # b1 chunk
                pl.BlockSpec((plan.tk, d_p), lambda i, k: (k, 0), **w_kwargs),  # W2 chunk
                pl.BlockSpec((1, d_p), lambda i, k: (0, 0)),                 # b2
            ],
            out_specs=pl.BlockSpec((plan.tm, d_p), lambda i, k: (i, 0)),
            scratch_shapes=[pltpu.VMEM((plan.tm, d_p), jnp.float32)],
        )
        kernel = _ffn_kernel_ktiled

    out_p = pl.pallas_call(kernel, grid_spec=grid_spec, **common)(
        x_p, w1_p, b1_p, w2_p, b2_p)
    return out_p[:M, :d_model].reshape(orig_shape)


def feed_forward(x, params: FFNParams, *, tm=None, dff_block=None, weight_buffers=None):
    """FFN over the last dim of x: relu(x @ W1 + b1) @ W2 + b2 (dropout = identity, eval).

    x: (..., d_model).  params: from prepare_ffn_params (padded/cast once at init time).
    tm:             row tile over M = prod(leading dims); None -> generation-aware auto.
    dff_block:      optional K-tile over dff; None -> full weight residency when the
                    VMEM budget allows, else the largest 128-multiple chunk that fits.
    weight_buffers: pipeline buffer count for the weight BlockSpecs; None -> 1 when the
                    weights are resident (num_k == 1), 2 otherwise (try 3 on v6e if
                    xprof shows exposed weight DMA in the K-tiled regime).
    """
    plan = _plan_ffn(tuple(x.shape), jnp.dtype(x.dtype), params, tm, dff_block,
                     weight_buffers)
    return _feed_forward_impl(x, params.w1, params.b1, params.w2, params.b2, plan=plan)


# --------------------------------------------------------------------------------------
# Deterministic init + pure-JAX reference
# --------------------------------------------------------------------------------------

def init_params(key, d_model, dim_feedforward, dtype=jnp.float32):
    """Deterministic init mirroring nn.Linear default U(-1/sqrt(fan_in), 1/sqrt(fan_in)),
    stored pre-transposed to (in, out) relative to PyTorch's (out, in)."""
    k1, k2, k3, k4 = jax.random.split(key, 4)
    bound1 = 1.0 / math.sqrt(d_model)
    bound2 = 1.0 / math.sqrt(dim_feedforward)
    w1 = jax.random.uniform(k1, (d_model, dim_feedforward), dtype, -bound1, bound1)
    b1 = jax.random.uniform(k2, (dim_feedforward,), dtype, -bound1, bound1)
    w2 = jax.random.uniform(k3, (dim_feedforward, d_model), dtype, -bound2, bound2)
    b2 = jax.random.uniform(k4, (d_model,), dtype, -bound2, bound2)
    return w1, b1, w2, b2


def _ffn_reference(x, w1, b1, w2, b2, compute_dtype=jnp.bfloat16):
    """Pure-JAX reference with the same bf16-operand / f32-accumulate compute path."""
    cdt = jnp.dtype(compute_dtype)
    h = jnp.dot(x.astype(cdt), w1.astype(cdt), preferred_element_type=jnp.float32) + b1
    h = jnp.maximum(h, 0.0).astype(cdt)
    y = jnp.dot(h, w2.astype(cdt), preferred_element_type=jnp.float32) + b2
    return y.astype(x.dtype)


if __name__ == "__main__":
    key = jax.random.PRNGKey(0)
    kx1, kx2, kx3, kp1, kp2 = jax.random.split(key, 5)

    # Case 1: resident path (num_k == 1), weights single-buffered where supported.
    d_model, dff = 128, 256
    seq, batch = 8, 2
    x = jax.random.normal(kx1, (seq, batch, d_model), dtype=jnp.float32)   # (T, N, d_model)
    w1, b1, w2, b2 = init_params(kp1, d_model, dff)
    params = prepare_ffn_params(w1, b1, w2, b2)         # pad/cast hoisted out of the call
    out = jax.block_until_ready(feed_forward(x, params))
    ref = _ffn_reference(x, w1, b1, w2, b2)
    assert out.shape == x.shape and out.dtype == x.dtype
    assert jnp.allclose(out, ref, atol=1e-2, rtol=1e-2)

    # Case 2: K-tiled reduction path (f32 accumulator, b2 folded into init), ragged rows.
    x2 = jax.random.normal(kx2, (5, 3, d_model), dtype=jnp.float32)
    out2 = jax.block_until_ready(feed_forward(x2, params, dff_block=128))
    ref2 = _ffn_reference(x2, w1, b1, w2, b2)
    assert out2.shape == x2.shape
    assert jnp.allclose(out2, ref2, atol=1e-2, rtol=1e-2)

    # Case 3: non-lane-aligned feature dims (padded to 128 at prepare time), explicit
    # double-buffered weights (covers the plain-BlockSpec path on every generation).
    d_model3, dff3 = 64, 80
    x3 = jax.random.normal(kx3, (3, 2, d_model3), dtype=jnp.float32)
    w13, b13, w23, b23 = init_params(kp2, d_model3, dff3)
    params3 = prepare_ffn_params(w13, b13, w23, b23)
    out3 = jax.block_until_ready(feed_forward(x3, params3, weight_buffers=2))
    ref3 = _ffn_reference(x3, w13, b13, w23, b23)
    assert out3.shape == x3.shape
    assert jnp.allclose(out3, ref3, atol=1e-2, rtol=1e-2)

    print("KERNEL_OK")
</pallas_src>

<mosaic_0001>
module attributes {stable_mosaic.version = 11 : i64} {
  func.func @_probe_copy_kernel(%arg0: i32, %arg1: memref<8x128xf32, #tpu.memory_space<vmem>>, %arg2: memref<8x128xf32, #tpu.memory_space<vmem>>) attributes {dimension_semantics = [#tpu.dimension_semantics<arbitrary>], iteration_bounds = array<i64: 1>, scalar_prefetch = 0 : i64, scratch_operands = 0 : i64, tpu.core_type = #tpu.core_type<tc>, window_params = [{pipeline_mode = #tpu.pipeline_mode<synchronous>, transform_indices = @transform_0, window_bounds = array<i64: 8, 128>}, {pipeline_mode = #tpu.pipeline_mode<synchronous>, transform_indices = @transform_1, window_bounds = array<i64: 8, 128>}]} {
    %c0 = arith.constant 0 : index
    %c0_0 = arith.constant 0 : index
    %0 = vector.load %arg1[%c0, %c0_0] : memref<8x128xf32, #tpu.memory_space<vmem>>, vector<8x128xf32>
    %c0_1 = arith.constant 0 : index
    %c0_2 = arith.constant 0 : index
    %1 = vector.load %arg2[%c0_1, %c0_2] : memref<8x128xf32, #tpu.memory_space<vmem>>, vector<8x128xf32>
    tpu.vector_store %arg2[%c0_1, %c0_2], %0 {strides = array<i32>} : memref<8x128xf32, #tpu.memory_space<vmem>>, vector<8x128xf32>,
    return
  }
  func.func @transform_0(%arg0: i32) -> (i32, i32) {
    %c0_i32 = arith.constant 0 : i32
    %c0_i32_0 = arith.constant 0 : i32
    %c0_i32_1 = arith.constant 0 : i32
    return %c0_i32, %c0_i32_0 : i32, i32
  }
  func.func @transform_1(%arg0: i32) -> (i32, i32) {
    %c0_i32 = arith.constant 0 : i32
    %c0_i32_0 = arith.constant 0 : i32
    %c0_i32_1 = arith.constant 0 : i32
    return %c0_i32, %c0_i32_0 : i32, i32
  }
}

module attributes {stable_mosaic.version = 11 : i64} {
  func.func @_ffn_kernel_resident(%arg0: i32, %arg1: memref<16x128xbf16, #tpu.memory_space<vmem>>, %arg2: memref<128x256xbf16, #tpu.memory_space<vmem>>, %arg3: memref<1x256xf32, #tpu.memory_space<vmem>>, %arg4: memref<256x128xbf16, #tpu.memory_space<vmem>>, %arg5: memref<1x128xf32, #tpu.memory_space<vmem>>, %arg6: memref<16x128xf32, #tpu.memory_space<vmem>>) attributes {dimension_semantics = [#tpu.dimension_semantics<parallel>], iteration_bounds = array<i64: 1>, scalar_prefetch = 0 : i64, scratch_operands = 0 : i64, tpu.core_type = #tpu.core_type<tc>, window_params = [{transform_indices = @transform_0, window_bounds = array<i64: 16, 128>}, {pipeline_mode = #tpu.pipeline_mode<synchronous>, transform_indices = @transform_1, window_bounds = array<i64: 128, 256>}, {pipeline_mode = #tpu.pipeline_mode<synchronous>, transform_indices = @transform_2, window_bounds = array<i64: 1, 256>}, {pipeline_mode = #tpu.pipeline_mode<synchronous>, transform_indices = @transform_3, window_bounds = array<i64: 256, 128>}, {pipeline_mode = #tpu.pipeline_mode<synchronous>, transform_indices = @transform_4, window_bounds = array<i64: 1, 128>}, {transform_indices = @transform_5, window_bounds = array<i64: 16, 128>}]} {
    %c0 = arith.constant 0 : index
    %c0_0 = arith.constant 0 : index
    %0 = vector.load %arg1[%c0, %c0_0] : memref<16x128xbf16, #tpu.memory_space<vmem>>, vector<16x128xbf16>
    %c0_1 = arith.constant 0 : index
    %c0_2 = arith.constant 0 : index
    %1 = vector.load %arg2[%c0_1, %c0_2] : memref<128x256xbf16, #tpu.memory_space<vmem>>, vector<128x256xbf16>
    %cst = arith.constant dense<0.000000e+00> : vector<16x256xf32>
    %2 = tpu.matmul %0, %1, %cst {dimension_numbers = #tpu.dot_dimension_numbers<[1], [0], [0], [1], [0, 0, 1, 1], [], []>} : vector<16x128xbf16>, vector<128x256xbf16>, vector<16x256xf32> -> vector<16x256xf32>
    %c0_3 = arith.constant 0 : index
    %c0_4 = arith.constant 0 : index
    %3 = vector.load %arg3[%c0_3, %c0_4] : memref<1x256xf32, #tpu.memory_space<vmem>>, vector<1x256xf32>
    %4 = vector.broadcast %3 : vector<1x256xf32> to vector<16x256xf32>
    %5 = arith.addf %2, %4 : vector<16x256xf32>
    %cst_5 = arith.constant 0.000000e+00 : f32
    %6 = vector.broadcast %cst_5 : f32 to vector<16x256xf32>
    %7 = arith.maximumf %5, %6 : vector<16x256xf32>
    %8 = arith.truncf %7 : vector<16x256xf32> to vector<16x256xbf16>
    %c0_6 = arith.constant 0 : index
    %c0_7 = arith.constant 0 : index
    %9 = vector.load %arg4[%c0_6, %c0_7] : memref<256x128xbf16, #tpu.memory_space<vmem>>, vector<256x128xbf16>
    %cst_8 = arith.constant dense<0.000000e+00> : vector<16x128xf32>
    %10 = tpu.matmul %8, %9, %cst_8 {dimension_numbers = #tpu.dot_dimension_numbers<[1], [0], [0], [1], [0, 0, 1, 1], [], []>} : vector<16x256xbf16>, vector<256x128xbf16>, vector<16x128xf32> -> vector<16x128xf32>
    %c0_9 = arith.constant 0 : index
    %c0_10 = arith.constant 0 : index
    %11 = vector.load %arg5[%c0_9, %c0_10] : memref<1x128xf32, #tpu.memory_space<vmem>>, vector<1x128xf32>
    %12 = vector.broadcast %11 : vector<1x128xf32> to vector<16x128xf32>
    %13 = arith.addf %10, %12 : vector<16x128xf32>
    %c0_11 = arith.constant 0 : index
    %c0_12 = arith.constant 0 : index
    %14 = vector.load %arg6[%c0_11, %c0_12] : memref<16x128xf32, #tpu.memory_space<vmem>>, vector<16x128xf32>
    tpu.vector_store %arg6[%c0_11, %c0_12], %13 {strides = array<i32>} : memref<16x128xf32, #tpu.memory_space<vmem>>, vector<16x128xf32>,
    return
  }
  func.func @transform_0(%arg0: i32) -> (i32, i32) {
    %c0_i32 = arith.constant 0 : i32
    %c0_i32_0 = arith.constant 0 : i32
    return %arg0, %c0_i32 : i32, i32
  }
  func.func @transform_1(%arg0: i32) -> (i32, i32) {
    %c0_i32 = arith.constant 0 : i32
    %c0_i32_0 = arith.constant 0 : i32
    %c0_i32_1 = arith.constant 0 : i32
    return %c0_i32, %c0_i32_0 : i32, i32
  }
  func.func @transform_2(%arg0: i32) -> (i32, i32) {
    %c0_i32 = arith.constant 0 : i32
    %c0_i32_0 = arith.constant 0 : i32
    %c0_i32_1 = arith.constant 0 : i32
    return %c0_i32, %c0_i32_0 : i32, i32
  }
  func.func @transform_3(%arg0: i32) -> (i32, i32) {
    %c0_i32 = arith.constant 0 : i32
    %c0_i32_0 = arith.constant 0 : i32
    %c0_i32_1 = arith.constant 0 : i32
    return %c0_i32, %c0_i32_0 : i32, i32
  }
  func.func @transform_4(%arg0: i32) -> (i32, i32) {
    %c0_i32 = arith.constant 0 : i32
    %c0_i32_0 = arith.constant 0 : i32
    %c0_i32_1 = arith.constant 0 : i32
    return %c0_i32, %c0_i32_0 : i32, i32
  }
  func.func @transform_5(%arg0: i32) -> (i32, i32) {
    %c0_i32 = arith.constant 0 : i32
    %c0_i32_0 = arith.constant 0 : i32
    return %arg0, %c0_i32 : i32, i32
  }
}

</mosaic_0001>

<llo_original>
// kernel: tpu_custom_call.1
$region0: #{tpu_custom_call.1}
  #allocation0 [shape = 'u32[]', space=smem, size = 0x4, offset = 0x4, fixed_abs, tag = 'smem constant byte address 0x4 - core index']
  #allocation1 [shape = 'u32[144,128]{1,0:T(1,128)}', space=vmem, size = 0x12000, scoped, tag = 'internal scratch']
  %s0 = inlined_call_operand.hbm [shape: f32[8,128], index: 0, kind: input, shape index: {}]
  %s1 = inlined_call_operand.hbm [shape: f32[8,128], index: 1, kind: output, shape index: {}]
  %s2 = sld [smem:[#allocation0]]
  $region18: #{tpu_custom_call.1} parent=0
    _
  %s4 = ssub.s32 1, %s2
  %s5 = scalar_select 0, %s4, %s2
  $region1: #{tpu_custom_call.1} parent=0
    #allocation2 [shape = 'u8[4096]{0}', space=vmem, size = 0x1000, scoped, tag = 'input window, operand 0, single buffered']
    #allocation3 [shape = 's32[1]{0}', space=sflag, size = 0x4, scoped, tag = 'scoped memory for tpu_custom_call.1']
    #allocation4 [shape = 's32[1]{0}', space=sflag, size = 0x4, scoped, tag = 'scoped memory for tpu_custom_call.1']
    #allocation5 [shape = 'u8[4096]{0}', space=vmem, size = 0x1000, scoped, tag = 'output window, operand 0, single buffered']
    %6 = vsyncpa [#allocation3], 0
    %7 = vsyncpa [#allocation4], 0
    // Predicated region
    $region2: #{tpu_custom_call.1} parent=1 // pred_check
      _
    $region3: #{tpu_custom_call.1} parent=1 // pred_check_branch
      %9 = sbr.rel (0) target = $region5
    $region4: #{tpu_custom_call.1} parent=1 // pred_region
      %s11 = ssub.s32 128, 128
      %12 = vsyncadd [#allocation3], %s11
      %s14 = sshll.u32 [#allocation2], 4
      %s15 = int_to_ptr.vmem [resolvable:$true] %s14
      %17 = dma.hbm_to_vmem [thread:$0]  %s0, 128, %s15, [#allocation3]
    $region5: #{tpu_custom_call.1} parent=1 // pred_fallthru
      _
    // Predicated region
    $region6: #{tpu_custom_call.1} parent=1 // pred_check
      _
    $region7: #{tpu_custom_call.1} parent=1 // pred_check_branch
      %19 = sbr.rel (0) target = $region9
    $region8: #{tpu_custom_call.1} parent=1 // pred_region
      %20 = dma.done [#allocation3], 128
    $region9: #{tpu_custom_call.1} parent=1 // pred_fallthru
      _
    %v21 = vld [vmem:[#allocation2] sm:$0xff]
    %22 = vst [vmem:[#allocation5] sm:$0xff] %v21
    // Predicated region
    $region10: #{tpu_custom_call.1} parent=1 // pred_check
      _
    $region11: #{tpu_custom_call.1} parent=1 // pred_check_branch
      %24 = sbr.rel (0) target = $region13
    $region12: #{tpu_custom_call.1} parent=1 // pred_region
      %s26 = ssub.s32 128, 128
      %27 = vsyncadd [#allocation4], %s26
      %s29 = sshll.u32 [#allocation5], 4
      %s30 = int_to_ptr.vmem [resolvable:$true] %s29
      %32 = dma.vmem_to_hbm [thread:$0]  %s30, 128, %s1, [#allocation4]
    $region13: #{tpu_custom_call.1} parent=1 // pred_fallthru
      _
    // Predicated region
    $region14: #{tpu_custom_call.1} parent=1 // pred_check
      _
    $region15: #{tpu_custom_call.1} parent=1 // pred_check_branch
      %34 = sbr.rel (0) target = $region17
    $region16: #{tpu_custom_call.1} parent=1 // pred_region
      %35 = dma.done [#allocation4], 128
    $region17: #{tpu_custom_call.1} parent=1 // pred_fallthru
      _
    %36 = vsyncpa [#allocation3], 1
    %37 = vsyncpa [#allocation4], 1

// kernel: _feed_forward_impl.1
$region0: #{_feed_forward_impl.1}
  #allocation0 [shape = 'u32[]', space=smem, size = 0x4, offset = 0x4, fixed_abs, tag = 'smem constant byte address 0x4 - core index']
  #allocation1 [shape = 'u32[144,128]{1,0:T(1,128)}', space=vmem, size = 0x12000, scoped, tag = 'internal scratch']
  %s0 = inlined_call_operand.vmem [shape: bf16[16,128], index: 0, kind: input, shape index: {}]
  %s1 = inlined_call_operand.hbm [shape: bf16[128,256], index: 1, kind: input, shape index: {}]
  %s2 = inlined_call_operand.vmem [shape: f32[1,256], index: 2, kind: input, shape index: {}]
  %s3 = inlined_call_operand.hbm [shape: bf16[256,128], index: 3, kind: input, shape index: {}]
  %s4 = inlined_call_operand.vmem [shape: f32[1,128], index: 4, kind: input, shape index: {}]
  %s5 = inlined_call_operand.hbm [shape: f32[16,128], index: 5, kind: output, shape index: {}]
  %s6 = sld [smem:[#allocation0]]
  $region38: #{_feed_forward_impl.1} parent=0
    _
  %s8 = ssub.s32 1, %s6
  %s9 = scalar_select 0, %s8, %s6
  $region1: #{_feed_forward_impl.1} parent=0
    #allocation2 [shape = 'u8[65536]{0}', space=vmem, size = 0x10000, scoped, tag = 'input window, operand 1, single buffered']
    #allocation3 [shape = 's32[1]{0}', space=sflag, size = 0x4, scoped, tag = 'scoped memory for _feed_forward_impl.1']
    #allocation4 [shape = 's32[1]{0}', space=sflag, size = 0x4, scoped, tag = 'scoped memory for _feed_forward_impl.1']
    #allocation5 [shape = 'u8[65536]{0}', space=vmem, size = 0x10000, scoped, tag = 'input window, operand 3, single buffered']
    #allocation6 [shape = 's32[1]{0}', space=sflag, size = 0x4, scoped, tag = 'scoped memory for _feed_forward_impl.1']
    #allocation7 [shape = 'u8[8192]{0}', space=vmem, size = 0x2000, scoped, tag = 'output window, operand 0, single buffered']
    %10 = vsyncpa [#allocation3], 0
    %11 = vsyncpa [#allocation6], 0
    %12 = vsyncpa [#allocation4], 0
    // Predicated region
    $region2: #{_feed_forward_impl.1} parent=1 // pred_check
      _
    $region3: #{_feed_forward_impl.1} parent=1 // pred_check_branch
      %14 = sbr.rel (0) target = $region5
    $region4: #{_feed_forward_impl.1} parent=1 // pred_region
      _
    $region5: #{_feed_forward_impl.1} parent=1 // pred_fallthru
      _
    // Predicated region
    $region6: #{_feed_forward_impl.1} parent=1 // pred_check
      _
    $region7: #{_feed_forward_impl.1} parent=1 // pred_check_branch
      %16 = sbr.rel (0) target = $region9
    $region8: #{_feed_forward_impl.1} parent=1 // pred_region
      %s18 = ssub.s32 2048, 2048
      %19 = vsyncadd [#allocation3], %s18
      %s20 = sshll.u32 [#allocation2], 4
      %s21 = int_to_ptr.vmem [resolvable:$true] %s20
      %26 = dma.hbm_to_vmem [thread:$0]  %s1, 2048, %s21, [#allocation3], 128, 128, 8
    $region9: #{_feed_forward_impl.1} parent=1 // pred_fallthru
      _
    // Predicated region
    $region10: #{_feed_forward_impl.1} parent=1 // pred_check
      _
    $region11: #{_feed_forward_impl.1} parent=1 // pred_check_branch
      %28 = sbr.rel (0) target = $region13
    $region12: #{_feed_forward_impl.1} parent=1 // pred_region
      _
    $region13: #{_feed_forward_impl.1} parent=1 // pred_fallthru
      _
    // Predicated region
    $region14: #{_feed_forward_impl.1} parent=1 // pred_check
      _
    $region15: #{_feed_forward_impl.1} parent=1 // pred_check_branch
      %30 = sbr.rel (0) target = $region17
    $region16: #{_feed_forward_impl.1} parent=1 // pred_region
      %s32 = ssub.s32 2048, 2048
      %33 = vsyncadd [#allocation6], %s32
      %s34 = sshll.u32 [#allocation5], 4
      %s35 = int_to_ptr.vmem [resolvable:$true] %s34
      %40 = dma.hbm_to_vmem [thread:$0]  %s3, 2048, %s35, [#allocation6], 64, 64, 4
    $region17: #{_feed_forward_impl.1} parent=1 // pred_fallthru
      _
    // Predicated region
    $region18: #{_feed_forward_impl.1} parent=1 // pred_check
      _
    $region19: #{_feed_forward_impl.1} parent=1 // pred_check_branch
      %42 = sbr.rel (0) target = $region21
    $region20: #{_feed_forward_impl.1} parent=1 // pred_region
      _
    $region21: #{_feed_forward_impl.1} parent=1 // pred_fallthru
      _
    // Predicated region
    $region22: #{_feed_forward_impl.1} parent=1 // pred_check
      _
    $region23: #{_feed_forward_impl.1} parent=1 // pred_check_branch
      %44 = sbr.rel (0) target = $region25
    $region24: #{_feed_forward_impl.1} parent=1 // pred_region
      %45 = dma.done [#allocation3], 2048
    $region25: #{_feed_forward_impl.1} parent=1 // pred_fallthru
      _
    // Predicated region
    $region26: #{_feed_forward_impl.1} parent=1 // pred_check
      _
    $region27: #{_feed_forward_impl.1} parent=1 // pred_check_branch
      %47 = sbr.rel (0) target = $region29
    $region28: #{_feed_forward_impl.1} parent=1 // pred_region
      %48 = dma.done [#allocation6], 2048
    $region29: #{_feed_forward_impl.1} parent=1 // pred_fallthru
      _
    %v50 = vld [vmem:[%s0] sm:$0xf]
    %v51 = vld [vmem:[%s0 + $0x4] sm:$0xf]
    %v52 = vld [vmem:[#allocation2] sm:$0xff]
    %v53 = vld [vmem:[#allocation2 + $0x8] sm:$0xff]
    %v54 = vld [vmem:[#allocation2 + $0x10] sm:$0xff]
    %v55 = vld [vmem:[#allocation2 + $0x18] sm:$0xff]
    %v56 = vld [vmem:[#allocation2 + $0x20] sm:$0xff]
    %v57 = vld [vmem:[#allocation2 + $0x28] sm:$0xff]
    %v58 = vld [vmem:[#allocation2 + $0x30] sm:$0xff]
    %v59 = vld [vmem:[#allocation2 + $0x38] sm:$0xff]
    %v60 = vld [vmem:[#allocation2 + $0x40] sm:$0xff]
    %v61 = vld [vmem:[#allocation2 + $0x48] sm:$0xff]
    %v62 = vld [vmem:[#allocation2 + $0x50] sm:$0xff]
    %v63 = vld [vmem:[#allocation2 + $0x58] sm:$0xff]
    %v64 = vld [vmem:[#allocation2 + $0x60] sm:$0xff]
    %v65 = vld [vmem:[#allocation2 + $0x68] sm:$0xff]
    %v66 = vld [vmem:[#allocation2 + $0x70] sm:$0xff]
    %v67 = vld [vmem:[#allocation2 + $0x78] sm:$0xff]
    %v68 = vld [vmem:[%s2] sm:$0x3]
    %v70 = vlaneseq
    %v71 = vshrl.u32 %v70, 7
    %v72 = vsub.s32 0, %v71
    %v73 = vrot.slane %v68, %v72
    %v74 = vlaneseq
    %v75 = vshrl.u32 %v74, 7
    %v76 = vsub.s32 1, %v75
    %v77 = vrot.slane %v68, %v76
    %v82 = vunpack.c.l.b16 %v50
    %v83 = vunpack.c.l.b16 %v51
    %v84 = vpack.c.b16 %v83, %v82
    %v102 = vunpack.c.l.b16 %v52
    %v103 = vunpack.c.h.b16 %v52
    %v104 = vunpack.c.l.b16 %v53
    %v105 = vunpack.c.h.b16 %v53
    %v106 = vunpack.c.l.b16 %v54
    %v107 = vunpack.c.h.b16 %v54
    %v108 = vunpack.c.l.b16 %v55
    %v109 = vunpack.c.h.b16 %v55
    %v110 = vunpack.c.l.b16 %v56
    %v111 = vunpack.c.h.b16 %v56
    %v112 = vunpack.c.l.b16 %v57
    %v113 = vunpack.c.h.b16 %v57
    %v114 = vunpack.c.l.b16 %v58
    %v115 = vunpack.c.h.b16 %v58
    %v116 = vunpack.c.l.b16 %v59
    %v117 = vunpack.c.h.b16 %v59
    %v118 = vunpack.c.l.b16 %v60
    %v119 = vunpack.c.h.b16 %v60
    %v120 = vunpack.c.l.b16 %v61
    %v121 = vunpack.c.h.b16 %v61
    %v122 = vunpack.c.l.b16 %v62
    %v123 = vunpack.c.h.b16 %v62
    %v124 = vunpack.c.l.b16 %v63
    %v125 = vunpack.c.h.b16 %v63
    %v126 = vunpack.c.l.b16 %v64
    %v127 = vunpack.c.h.b16 %v64
    %v128 = vunpack.c.l.b16 %v65
    %v129 = vunpack.c.h.b16 %v65
    %v130 = vunpack.c.l.b16 %v66
    %v131 = vunpack.c.h.b16 %v66
    %v132 = vunpack.c.l.b16 %v67
    %v133 = vunpack.c.h.b16 %v67
    %v134 = vpack.c.b16 %v104, %v102
    %v135 = vpack.c.b16 %v105, %v103
    %v136 = vpack.c.b16 %v108, %v106
    %v137 = vpack.c.b16 %v109, %v107
    %v138 = vpack.c.b16 %v112, %v110
    %v139 = vpack.c.b16 %v113, %v111
    %v140 = vpack.c.b16 %v116, %v114
    %v141 = vpack.c.b16 %v117, %v115
    %v142 = vpack.c.b16 %v120, %v118
    %v143 = vpack.c.b16 %v121, %v119
    %v144 = vpack.c.b16 %v124, %v122
    %v145 = vpack.c.b16 %v125, %v123
    %v146 = vpack.c.b16 %v128, %v126
    %v147 = vpack.c.b16 %v129, %v127
    %v148 = vpack.c.b16 %v132, %v130
    %v149 = vpack.c.b16 %v133, %v131
    %166 = vmatprep.subr.bf16.mxu0 %v135
    %167 = vmatpush1.bf16.msra.mxu0 %v134
    %168 = vmatprep.subr.bf16.mxu0 %v137
    %169 = vmatpush1.bf16.msra.mxu0 %v136
    %170 = vmatprep.subr.bf16.mxu0 %v139
    %171 = vmatpush1.bf16.msra.mxu0 %v138
    %172 = vmatprep.subr.bf16.mxu0 %v141
    %173 = vmatpush1.bf16.msra.mxu0 %v140
    %174 = vmatprep.subr.bf16.mxu0 %v143
    %175 = vmatpush1.bf16.msra.mxu0 %v142
    %176 = vmatprep.subr.bf16.mxu0 %v145
    %177 = vmatpush1.bf16.msra.mxu0 %v144
    %178 = vmatprep.subr.bf16.mxu0 %v147
    %179 = vmatpush1.bf16.msra.mxu0 %v146
    %180 = vmatprep.subr.bf16.mxu0 %v149
    %181 = vmatpush1.bf16.msra.mxu0 %v148
    %182 = vmatprep.subr.bf16.mxu0 0
    %183 = vmatpush1.bf16.msra.mxu0 0
    %184 = vmatprep.subr.bf16.mxu0 0
    %185 = vmatpush1.bf16.msra.mxu0 0
    %186 = vmatprep.subr.bf16.mxu0 0
    %187 = vmatpush1.bf16.msra.mxu0 0
    %188 = vmatprep.subr.bf16.mxu0 0
    %189 = vmatpush1.bf16.msra.mxu0 0
    %190 = vmatprep.subr.bf16.mxu0 0
    %191 = vmatpush1.bf16.msra.mxu0 0
    %192 = vmatprep.subr.bf16.mxu0 0
    %193 = vmatpush1.bf16.msra.mxu0 0
    %194 = vmatprep.subr.bf16.mxu0 0
    %195 = vmatpush1.bf16.msra.mxu0 0
    %196 = vmatprep.subr.bf16.mxu0 0
    %197 = vmatpush1.bf16.msra.mxu0 0
    %198 = vmatprep.mubr.bf16.mxu0 0
    %199 = vmatmul.mubr.bf16.gmra.mrb[0].mxu0 %v84
    %v200 = vpop.f32.mrb[0].mxu0
    %v201 = vadd.f32 %v73, %v200
    %v202 = vpop.f32.mrb[0].mxu0
    %v203 = vadd.f32 %v77, %v202
    %v204 = vpop.f32.mrb[0].mxu0
    %v205 = vadd.f32 %v73, %v204
    %v206 = vpop.f32.mrb[0].mxu0
    %v207 = vadd.f32 %v77, %v206
    %208 = vdwg.mxu0
    %v209 = vmax.f32 %v201, 0.0
    %v210 = vmax.f32 %v203, 0.0
    %v211 = vmax.f32 %v205, 0.0
    %v212 = vmax.f32 %v207, 0.0
    %v213 = vpack.c.bf16 %v211, %v209
    %v214 = vpack.c.bf16 %v212, %v210
    %v215 = vld [vmem:[#allocation5] sm:$0xf]
    %v216 = vld [vmem:[#allocation5 + $0x4] sm:$0xf]
    %v217 = vld [vmem:[#allocation5 + $0x8] sm:$0xf]
    %v218 = vld [vmem:[#allocation5 + $0xc] sm:$0xf]
    %v219 = vld [vmem:[#allocation5 + $0x10] sm:$0xf]
    %v220 = vld [vmem:[#allocation5 + $0x14] sm:$0xf]
    %v221 = vld [vmem:[#allocation5 + $0x18] sm:$0xf]
    %v222 = vld [vmem:[#allocation5 + $0x1c] sm:$0xf]
    %v223 = vld [vmem:[#allocation5 + $0x20] sm:$0xf]
    %v224 = vld [vmem:[#allocation5 + $0x24] sm:$0xf]
    %v225 = vld [vmem:[#allocation5 + $0x28] sm:$0xf]
    %v226 = vld [vmem:[#allocation5 + $0x2c] sm:$0xf]
    %v227 = vld [vmem:[#allocation5 + $0x30] sm:$0xf]
    %v228 = vld [vmem:[#allocation5 + $0x34] sm:$0xf]
    %v229 = vld [vmem:[#allocation5 + $0x38] sm:$0xf]
    %v230 = vld [vmem:[#allocation5 + $0x3c] sm:$0xf]
    %v231 = vld [vmem:[#allocation5 + $0x40] sm:$0xf]
    %v232 = vld [vmem:[#allocation5 + $0x44] sm:$0xf]
    %v233 = vld [vmem:[#allocation5 + $0x48] sm:$0xf]
    %v234 = vld [vmem:[#allocation5 + $0x4c] sm:$0xf]
    %v235 = vld [vmem:[#allocation5 + $0x50] sm:$0xf]
    %v236 = vld [vmem:[#allocation5 + $0x54] sm:$0xf]
    %v237 = vld [vmem:[#allocation5 + $0x58] sm:$0xf]
    %v238 = vld [vmem:[#allocation5 + $0x5c] sm:$0xf]
    %v239 = vld [vmem:[#allocation5 + $0x60] sm:$0xf]
    %v240 = vld [vmem:[#allocation5 + $0x64] sm:$0xf]
    %v241 = vld [vmem:[#allocation5 + $0x68] sm:$0xf]
    %v242 = vld [vmem:[#allocation5 + $0x6c] sm:$0xf]
    %v243 = vld [vmem:[#allocation5 + $0x70] sm:$0xf]
    %v244 = vld [vmem:[#allocation5 + $0x74] sm:$0xf]
    %v245 = vld [vmem:[#allocation5 + $0x78] sm:$0xf]
    %v246 = vld [vmem:[#allocation5 + $0x7c] sm:$0xf]
    %v247 = vld [vmem:[%s4] sm:$0x1]
    %v249 = vlaneseq
    %v250 = vshrl.u32 %v249, 7
    %v251 = vsub.s32 0, %v250
    %v252 = vrot.slane %v247, %v251
    %v286 = vunpack.c.l.b16 %v215
    %v287 = vunpack.c.l.b16 %v216
    %v288 = vunpack.c.l.b16 %v217
    %v289 = vunpack.c.l.b16 %v218
    %v290 = vunpack.c.l.b16 %v219
    %v291 = vunpack.c.l.b16 %v220
    %v292 = vunpack.c.l.b16 %v221
    %v293 = vunpack.c.l.b16 %v222
    %v294 = vunpack.c.l.b16 %v223
    %v295 = vunpack.c.l.b16 %v224
    %v296 = vunpack.c.l.b16 %v225
    %v297 = vunpack.c.l.b16 %v226
    %v298 = vunpack.c.l.b16 %v227
    %v299 = vunpack.c.l.b16 %v228
    %v300 = vunpack.c.l.b16 %v229
    %v301 = vunpack.c.l.b16 %v230
    %v302 = vunpack.c.l.b16 %v231
    %v303 = vunpack.c.l.b16 %v232
    %v304 = vunpack.c.l.b16 %v233
    %v305 = vunpack.c.l.b16 %v234
    %v306 = vunpack.c.l.b16 %v235
    %v307 = vunpack.c.l.b16 %v236
    %v308 = vunpack.c.l.b16 %v237
    %v309 = vunpack.c.l.b16 %v238
    %v310 = vunpack.c.l.b16 %v239
    %v311 = vunpack.c.l.b16 %v240
    %v312 = vunpack.c.l.b16 %v241
    %v313 = vunpack.c.l.b16 %v242
    %v314 = vunpack.c.l.b16 %v243
    %v315 = vunpack.c.l.b16 %v244
    %v316 = vunpack.c.l.b16 %v245
    %v317 = vunpack.c.l.b16 %v246
    %v318 = vpack.c.b16 %v287, %v286
    %v319 = vpack.c.b16 %v289, %v288
    %v320 = vpack.c.b16 %v291, %v290
    %v321 = vpack.c.b16 %v293, %v292
    %v322 = vpack.c.b16 %v295, %v294
    %v323 = vpack.c.b16 %v297, %v296
    %v324 = vpack.c.b16 %v299, %v298
    %v325 = vpack.c.b16 %v301, %v300
    %v326 = vpack.c.b16 %v303, %v302
    %v327 = vpack.c.b16 %v305, %v304
    %v328 = vpack.c.b16 %v307, %v306
    %v329 = vpack.c.b16 %v309, %v308
    %v330 = vpack.c.b16 %v311, %v310
    %v331 = vpack.c.b16 %v313, %v312
    %v332 = vpack.c.b16 %v315, %v314
    %v333 = vpack.c.b16 %v317, %v316
    %350 = vmatprep.subr.bf16.mxu0 0
    %351 = vmatpush1.bf16.msra.mxu0 %v318
    %352 = vmatprep.subr.bf16.mxu0 0
    %353 = vmatpush1.bf16.msra.mxu0 %v319
    %354 = vmatprep.subr.bf16.mxu0 0
    %355 = vmatpush1.bf16.msra.mxu0 %v320
    %356 = vmatprep.subr.bf16.mxu0 0
    %357 = vmatpush1.bf16.msra.mxu0 %v321
    %358 = vmatprep.subr.bf16.mxu0 0
    %359 = vmatpush1.bf16.msra.mxu0 %v322
    %360 = vmatprep.subr.bf16.mxu0 0
    %361 = vmatpush1.bf16.msra.mxu0 %v323
    %362 = vmatprep.subr.bf16.mxu0 0
    %363 = vmatpush1.bf16.msra.mxu0 %v324
    %364 = vmatprep.subr.bf16.mxu0 0
    %365 = vmatpush1.bf16.msra.mxu0 %v325
    %366 = vmatprep.subr.bf16.mxu0 0
    %367 = vmatpush1.bf16.msra.mxu0 %v326
    %368 = vmatprep.subr.bf16.mxu0 0
    %369 = vmatpush1.bf16.msra.mxu0 %v327
    %370 = vmatprep.subr.bf16.mxu0 0
    %371 = vmatpush1.bf16.msra.mxu0 %v328
    %372 = vmatprep.subr.bf16.mxu0 0
    %373 = vmatpush1.bf16.msra.mxu0 %v329
    %374 = vmatprep.subr.bf16.mxu0 0
    %375 = vmatpush1.bf16.msra.mxu0 %v330
    %376 = vmatprep.subr.bf16.mxu0 0
    %377 = vmatpush1.bf16.msra.mxu0 %v331
    %378 = vmatprep.subr.bf16.mxu0 0
    %379 = vmatpush1.bf16.msra.mxu0 %v332
    %380 = vmatprep.subr.bf16.mxu0 0
    %381 = vmatpush1.bf16.msra.mxu0 %v333
    %382 = vmatprep.mubr.bf16.mxu0 %v214
    %383 = vmatmul.mubr.bf16.gmra.mrb[0].mxu0 %v213
    %v384 = vpop.f32.mrb[0].mxu0
    %v385 = vadd.f32 %v252, %v384
    %v386 = vpop.f32.mrb[0].mxu0
    %v387 = vpop.f32.mrb[0].mxu0
    %v388 = vadd.f32 %v252, %v387
    %v389 = vpop.f32.mrb[0].mxu0
    %390 = vdwg.mxu0
    %391 = vst [vmem:[#allocation7] sm:$0xff] %v385
    %392 = vst [vmem:[#allocation7 + $0x8] sm:$0xff] %v388
    // Predicated region
    $region30: #{_feed_forward_impl.1} parent=1 // pred_check
      _
    $region31: #{_feed_forward_impl.1} parent=1 // pred_check_branch
      %394 = sbr.rel (0) target = $region33
    $region32: #{_feed_forward_impl.1} parent=1 // pred_region
      %s396 = ssub.s32 256, 256
      %397 = vsyncadd [#allocation4], %s396
      %s398 = sshll.u32 [#allocation7], 4
      %s399 = int_to_ptr.vmem [resolvable:$true] %s398
      %404 = dma.vmem_to_hbm [thread:$0]  %s399, 256, %s5, [#allocation4], 128, 128, 8
    $region33: #{_feed_forward_impl.1} parent=1 // pred_fallthru
      _
    // Predicated region
    $region34: #{_feed_forward_impl.1} parent=1 // pred_check
      _
    $region35: #{_feed_forward_impl.1} parent=1 // pred_check_branch
      %406 = sbr.rel (0) target = $region37
    $region36: #{_feed_forward_impl.1} parent=1 // pred_region
      %407 = dma.done [#allocation4], 256
    $region37: #{_feed_forward_impl.1} parent=1 // pred_fallthru
      _
    %408 = vsyncpa [#allocation3], 1
    %409 = vsyncpa [#allocation6], 1
    %410 = vsyncpa [#allocation4], 1

</llo_original>
